<compile_context>
chip_gen: v7x
topology: tpu7x:2x2x1
jax: 0.10.0
libtpu: 0.0.40
codegen_flags: <defaults>
</compile_context>

<pallas_src>
import functools

import jax
import jax.numpy as jnp
from jax.experimental import pallas as pl
from jax.experimental.pallas import tpu as pltpu


def _round_up(x, m):
    return ((x + m - 1) // m) * m


def _cdiv(a, b):
    return (a + b - 1) // b


# ----------------------------------------------------------------------------- kernel


def abmil_stream_kernel(x_ref, w1t_ref, b1_ref, w2r_ref,
                        scores_ref, m_ref, l_ref, acc_ref, *, n_valid):
    """One (split, tile) grid step of the streaming online-softmax ABMIL pass."""
    split = pl.program_id(0)
    step = pl.program_id(1)
    tiles_per_split = pl.num_programs(1)
    tile_n = x_ref.shape[0]

    # Global tile index (may point past the last real tile for grid-padding tiles).
    gt = split * tiles_per_split + step

    @pl.when(step == 0)
    def _init():
        m_ref[...] = jnp.full(m_ref.shape, -jnp.inf, jnp.float32)
        l_ref[...] = jnp.zeros(l_ref.shape, jnp.float32)
        acc_ref[...] = jnp.zeros(acc_ref.shape, jnp.float32)

    # Row-validity mask ([tile_n, 1], cheap) for ragged / grid-padding tiles.
    row = jax.lax.broadcasted_iota(jnp.int32, (tile_n, 1), 0)
    valid = (gt * tile_n + row) < n_valid

    # x arrives in its HBM dtype (f32 or bf16); cast to bf16 in-kernel (hidden under DMA).
    x_bf = x_ref[...].astype(jnp.bfloat16)                              # [tile_n, L]

    # Attention MLP: Linear(L->D) on the MXU (bf16 in, f32 acc) -> tanh (EUP).
    h = jnp.tanh(
        jnp.dot(x_bf, w1t_ref[...], preferred_element_type=jnp.float32)
        + b1_ref[...])                                                  # [tile_n, D] f32

    # Linear(D->1) as VPU multiply + lane reduce (D is small); b2 dropped (shift inv.).
    s = jnp.sum(h * w2r_ref[...], axis=-1, keepdims=True)              # [tile_n, 1] f32
    s = jnp.where(valid, s, -jnp.inf)

    # Online softmax statistics.  m_safe guards the grid-padding case where a whole
    # split is empty and m would stay -inf (exp(-inf - -inf) = nan otherwise).
    m_old = m_ref[...]                                                  # [1, 1]
    m_new = jnp.maximum(m_old, jnp.max(s, axis=0, keepdims=True))      # [1, 1]
    m_safe = jnp.maximum(m_new, -1e30)
    alpha = jnp.exp(m_old - m_safe)                                     # [1, 1]
    e = jnp.exp(s - m_safe)                                             # [tile_n, 1]; invalid -> 0
    l_ref[...] = alpha * l_ref[...] + jnp.sum(e, axis=0, keepdims=True)
    m_ref[...] = m_new

    # Raw (unnormalized) scores out; normalization happens in the wrapper.
    scores_ref[...] = s

    # e-weighted row accumulation on the MXU:  acc += ones[1, tile_n] @ (e * x).
    e_bf = e.astype(jnp.bfloat16)                                       # [tile_n, 1]
    ones_row = jnp.ones((1, tile_n), jnp.bfloat16)

    def update_acc(x_tile):
        weighted = e_bf * x_tile                                        # [tile_n, L] bf16
        acc_ref[...] = alpha * acc_ref[...] + jnp.dot(
            ones_row, weighted, preferred_element_type=jnp.float32)     # [1, L] f32

    if n_valid % tile_n == 0:
        # No ragged rows anywhere: grid-padding tiles read a clamped, fully valid
        # block and contribute exactly zero (e == 0), so x never needs masking.
        update_acc(x_bf)
    else:
        ragged_from = n_valid // tile_n  # first tile index containing invalid rows

        @pl.when(gt < ragged_from)
        def _full_tile():
            update_acc(x_bf)

        @pl.when(gt >= ragged_from)
        def _ragged_tile():
            # Out-of-range rows may hold non-finite garbage (0 * inf = nan on the MXU),
            # so zero them — but only on ragged / padding tiles.
            update_acc(jnp.where(valid, x_bf, jnp.zeros_like(x_bf)))


# ----------------------------------------------------------------------------- wrapper


def prepare_params(w1, b1, w2, b2, wc, bc):
    """One-time weight layout prep (transposes / casts hoisted out of the call path)."""
    del b2  # softmax over instances is shift invariant -> b2 cannot affect A, M, Y_prob
    return dict(
        w1t=jnp.asarray(w1, jnp.bfloat16).T,                 # [L, D] bf16 (MXU input)
        b1=jnp.asarray(b1, jnp.float32).reshape(1, -1),      # [1, D]
        w2r=jnp.asarray(w2, jnp.float32).reshape(1, -1),     # [1, D]
        wcr=jnp.asarray(wc, jnp.float32).reshape(1, -1),     # [1, L*K]
        bc=jnp.asarray(bc, jnp.float32).reshape(1, 1),       # [1, 1]
    )


@functools.partial(jax.jit, static_argnames=("tile_n", "num_splits"))
def abmil_forward(x, params, *, tile_n=2048, num_splits=2):
    """x: [N, L] (f32 or bf16). Returns (Y_prob [K,1], A [K,N]) with K == 1."""
    N, L = x.shape
    D = params["w1t"].shape[1]
    K = 1
    x_bytes = jnp.dtype(x.dtype).itemsize

    # ---- tile-size selection: big enough to amortize per-step overhead, small enough
    # that the double-buffered x window (2 buffers) fits v7x's 64 MiB VMEM with room.
    max_tile_rows = max(8, (((8 << 20) // (L * x_bytes)) // 8) * 8)   # <= 8 MiB / buffer
    tile_n = min(_round_up(min(tile_n, max(N, 1)), 8), max_tile_rows)

    num_tiles = _cdiv(N, tile_n)
    num_splits = max(1, min(num_splits, num_tiles))
    tiles_per_split = _cdiv(num_tiles, num_splits)
    padded_n = num_splits * tiles_per_split * tile_n

    # Explicit scoped-VMEM budget: double-buffered x + resident weights + in-kernel
    # temporaries (bf16 tile copy, weighted product, h) + small outputs + slack.
    vmem_limit = min(
        2 * tile_n * L * x_bytes            # x double buffer
        + tile_n * L * 4                    # bf16 copy + bf16 weighted product
        + tile_n * D * 8                    # h / tanh temporaries
        + 2 * (L * D * 2 + 2 * D * 4)       # w1t / b1 / w2r buffers
        + 2 * (tile_n * 4 + (2 + L) * 4)    # score + (m, l, acc) output buffers
        + (8 << 20),                        # slack
        48 << 20,
    )

    def x_index_map(c, i):
        # Grid-padding tiles are clamped onto the last real block (their rows are all
        # masked out in-kernel), keeping every DMA in bounds.
        return (jnp.minimum(c * tiles_per_split + i, num_tiles - 1), 0)

    scores, m_parts, l_parts, acc_parts = pl.pallas_call(
        functools.partial(abmil_stream_kernel, n_valid=N),
        grid=(num_splits, tiles_per_split),
        in_specs=[
            pl.BlockSpec((tile_n, L), x_index_map),                        # x (streamed)
            pl.BlockSpec((L, D), lambda c, i: (0, 0)),                     # W1^T (resident)
            pl.BlockSpec((1, D), lambda c, i: (0, 0)),                     # b1
            pl.BlockSpec((1, D), lambda c, i: (0, 0)),                     # w2 row
        ],
        out_specs=(
            pl.BlockSpec((tile_n, 1), lambda c, i: (c * tiles_per_split + i, 0)),
            pl.BlockSpec((None, 1, 1), lambda c, i: (c, 0, 0)),            # per-split m
            pl.BlockSpec((None, 1, 1), lambda c, i: (c, 0, 0)),            # per-split l
            pl.BlockSpec((None, 1, L), lambda c, i: (c, 0, 0)),            # per-split acc
        ),
        out_shape=(
            jax.ShapeDtypeStruct((padded_n, 1), jnp.float32),
            jax.ShapeDtypeStruct((num_splits, 1, 1), jnp.float32),
            jax.ShapeDtypeStruct((num_splits, 1, 1), jnp.float32),
            jax.ShapeDtypeStruct((num_splits, 1, L), jnp.float32),
        ),
        compiler_params=pltpu.CompilerParams(
            dimension_semantics=("parallel", "arbitrary"),
            vmem_limit_bytes=int(vmem_limit),
        ),
    )(x, params["w1t"], params["b1"], params["w2r"])

    # ---- tiny jnp epilogue (fused by XLA): cross-split log-sum-exp combine,
    # softmax normalization of A, and the L->1 classifier.
    m_g = jnp.max(m_parts)                                  # scalar (finite for N >= 1)
    scale = jnp.exp(m_parts - m_g)                          # [ns,1,1]; empty split -> 0
    l_g = jnp.sum(l_parts * scale)                          # scalar
    M = jnp.sum(acc_parts * scale, axis=0) / l_g            # [1, L]
    y_prob = jnp.sum(M * params["wcr"], axis=-1, keepdims=True) + params["bc"]   # [K, 1]
    A = (jnp.exp(scores[:N, 0] - m_g) / l_g).reshape(K, N)  # [K, N]
    return y_prob, A


# ----------------------------------------------------------------------------- test


def _orthogonal(key, shape):
    """Deterministic orthogonal init (rows orthonormal for fan_out <= fan_in)."""
    rows, cols = shape
    n = max(rows, cols)
    g = jax.random.normal(key, (n, n), dtype=jnp.float32)
    q, r = jnp.linalg.qr(g)
    q = q * jnp.sign(jnp.diag(r))[None, :]
    return q[:rows, :cols]


def _reference(x, w1, b1, w2, b2, wc, bc):
    # Mirrors the kernel's numerics: x / W1 quantized to bf16, everything else f32.
    xq = x.astype(jnp.bfloat16).astype(jnp.float32)
    w1q = w1.astype(jnp.bfloat16).astype(jnp.float32)
    with jax.default_matmul_precision("highest"):
        a_raw = jnp.tanh(xq @ w1q.T + b1) @ w2.T + b2        # [N, K]
        a = jax.nn.softmax(a_raw.T, axis=1)                  # [K, N]
        M = a @ xq                                           # [K, L]
        yprob = M @ wc.T + bc                                # [K, 1]
    return yprob, a


if __name__ == "__main__":
    # Small shapes consistent with the module (L = input_size, D = 128, K = 1).
    # N=40, tile_n=16, num_splits=2 exercises: multiple streamed tiles, a ragged last
    # tile, a grid-padding tile, and the cross-split log-sum-exp combine.
    N, L, D, K = 40, 256, 128, 1

    key = jax.random.PRNGKey(0)
    kx, k1, k2, k3 = jax.random.split(key, 4)

    x = jax.random.normal(kx, (N, L), dtype=jnp.float32)

    # Parameters (orthogonal weights, zero biases — matches apply_sparse_init).
    w1 = _orthogonal(k1, (D, L))                             # attention Linear(L, D)
    b1 = jnp.zeros((D,), jnp.float32)
    w2 = _orthogonal(k2, (K, D))                             # attention Linear(D, K)
    b2 = jnp.zeros((K,), jnp.float32)
    wc = _orthogonal(k3, (1, L * K))                         # classifier Linear(L*K, 1)
    bc = jnp.zeros((1,), jnp.float32)

    params = prepare_params(w1, b1, w2, b2, wc, bc)

    yprob, A = abmil_forward(x, params, tile_n=16, num_splits=2)
    jax.block_until_ready((yprob, A))

    yref, aref = _reference(x, w1, b1, w2, b2, wc, bc)

    assert yprob.shape == (K, 1) and A.shape == (K, N)
    assert jnp.allclose(A, aref, atol=1e-4, rtol=1e-4), "attention mismatch"
    assert jnp.allclose(yprob, yref, atol=2e-3, rtol=2e-3), "Y_prob mismatch"

    print("KERNEL_OK")
</pallas_src>

<mosaic_0001>
module attributes {stable_mosaic.version = 11 : i64} {
  func.func @abmil_stream_kernel(%arg0: i32, %arg1: i32, %arg2: memref<16x256xf32, #tpu.memory_space<vmem>>, %arg3: memref<256x128xbf16, #tpu.memory_space<vmem>>, %arg4: memref<1x128xf32, #tpu.memory_space<vmem>>, %arg5: memref<1x128xf32, #tpu.memory_space<vmem>>, %arg6: memref<16x1xf32, #tpu.memory_space<vmem>>, %arg7: memref<1x1x1xf32, #tpu.memory_space<vmem>>, %arg8: memref<1x1x1xf32, #tpu.memory_space<vmem>>, %arg9: memref<1x1x256xf32, #tpu.memory_space<vmem>>) attributes {dimension_semantics = [#tpu.dimension_semantics<parallel>, #tpu.dimension_semantics<arbitrary>], iteration_bounds = array<i64: 2, 2>, scalar_prefetch = 0 : i64, scratch_operands = 0 : i64, tpu.core_type = #tpu.core_type<tc>, window_params = [{transform_indices = @transform_0, window_bounds = array<i64: 16, 256>}, {pipeline_mode = #tpu.pipeline_mode<synchronous>, transform_indices = @transform_1, window_bounds = array<i64: 256, 128>}, {pipeline_mode = #tpu.pipeline_mode<synchronous>, transform_indices = @transform_2, window_bounds = array<i64: 1, 128>}, {pipeline_mode = #tpu.pipeline_mode<synchronous>, transform_indices = @transform_3, window_bounds = array<i64: 1, 128>}, {transform_indices = @transform_4, window_bounds = array<i64: 16, 1>}, {transform_indices = @transform_5, window_bounds = array<i64: 1, 1, 1>}, {transform_indices = @transform_6, window_bounds = array<i64: 1, 1, 1>}, {transform_indices = @transform_7, window_bounds = array<i64: 1, 1, 256>}]} {
    %c2_i32 = arith.constant 2 : i32
    %0 = arith.muli %arg0, %c2_i32 : i32
    %1 = arith.addi %0, %arg1 : i32
    %c0_i32 = arith.constant 0 : i32
    %2 = arith.cmpi eq, %arg1, %c0_i32 : i32
    %3 = arith.extui %2 : i1 to i32
    %c0_i32_0 = arith.constant 0 : i32
    %4 = arith.cmpi ne, %3, %c0_i32_0 : i32
    scf.if %4 {
      %cst_32 = arith.constant 0xFF800000 : f32
      %59 = vector.broadcast %cst_32 : f32 to vector<1x1xf32>
      %c0_33 = arith.constant 0 : index
      %c0_34 = arith.constant 0 : index
      %c0_35 = arith.constant 0 : index
      %60 = vector.load %arg7[%c0_33, %c0_34, %c0_35] : memref<1x1x1xf32, #tpu.memory_space<vmem>>, vector<1x1x1xf32>
      %61 = vector.shape_cast %60 : vector<1x1x1xf32> to vector<1x1xf32>
      %62 = vector.shape_cast %59 : vector<1x1xf32> to vector<1x1x1xf32>
      tpu.vector_store %arg7[%c0_33, %c0_34, %c0_35], %62 {strides = array<i32>} : memref<1x1x1xf32, #tpu.memory_space<vmem>>, vector<1x1x1xf32>,
      %cst_36 = arith.constant 0.000000e+00 : f32
      %63 = vector.broadcast %cst_36 : f32 to vector<1x1xf32>
      %c0_37 = arith.constant 0 : index
      %c0_38 = arith.constant 0 : index
      %c0_39 = arith.constant 0 : index
      %64 = vector.load %arg8[%c0_37, %c0_38, %c0_39] : memref<1x1x1xf32, #tpu.memory_space<vmem>>, vector<1x1x1xf32>
      %65 = vector.shape_cast %64 : vector<1x1x1xf32> to vector<1x1xf32>
      %66 = vector.shape_cast %63 : vector<1x1xf32> to vector<1x1x1xf32>
      tpu.vector_store %arg8[%c0_37, %c0_38, %c0_39], %66 {strides = array<i32>} : memref<1x1x1xf32, #tpu.memory_space<vmem>>, vector<1x1x1xf32>,
      %cst_40 = arith.constant 0.000000e+00 : f32
      %67 = vector.broadcast %cst_40 : f32 to vector<1x256xf32>
      %c0_41 = arith.constant 0 : index
      %c0_42 = arith.constant 0 : index
      %c0_43 = arith.constant 0 : index
      %68 = vector.load %arg9[%c0_41, %c0_42, %c0_43] : memref<1x1x256xf32, #tpu.memory_space<vmem>>, vector<1x1x256xf32>
      %69 = vector.shape_cast %68 : vector<1x1x256xf32> to vector<1x256xf32>
      %70 = vector.shape_cast %67 : vector<1x256xf32> to vector<1x1x256xf32>
      tpu.vector_store %arg9[%c0_41, %c0_42, %c0_43], %70 {strides = array<i32>} : memref<1x1x256xf32, #tpu.memory_space<vmem>>, vector<1x1x256xf32>,
    } else {
    }
    %5 = tpu.iota {dimensions = array<i32: 0>} : vector<16x1xi32>
    %c16_i32 = arith.constant 16 : i32
    %6 = arith.muli %1, %c16_i32 : i32
    %7 = vector.broadcast %6 : i32 to vector<16x1xi32>
    %8 = arith.addi %7, %5 : vector<16x1xi32>
    %c40_i32 = arith.constant 40 : i32
    %9 = vector.broadcast %c40_i32 : i32 to vector<16x1xi32>
    %10 = arith.cmpi slt, %8, %9 : vector<16x1xi32>
    %c0 = arith.constant 0 : index
    %c0_1 = arith.constant 0 : index
    %11 = vector.load %arg2[%c0, %c0_1] : memref<16x256xf32, #tpu.memory_space<vmem>>, vector<16x256xf32>
    %12 = arith.truncf %11 : vector<16x256xf32> to vector<16x256xbf16>
    %c0_2 = arith.constant 0 : index
    %c0_3 = arith.constant 0 : index
    %13 = vector.load %arg3[%c0_2, %c0_3] : memref<256x128xbf16, #tpu.memory_space<vmem>>, vector<256x128xbf16>
    %cst = arith.constant dense<0.000000e+00> : vector<16x128xf32>
    %14 = tpu.matmul %12, %13, %cst {dimension_numbers = #tpu.dot_dimension_numbers<[1], [0], [0], [1], [0, 0, 1, 1], [], []>} : vector<16x256xbf16>, vector<256x128xbf16>, vector<16x128xf32> -> vector<16x128xf32>
    %c0_4 = arith.constant 0 : index
    %c0_5 = arith.constant 0 : index
    %15 = vector.load %arg4[%c0_4, %c0_5] : memref<1x128xf32, #tpu.memory_space<vmem>>, vector<1x128xf32>
    %16 = vector.broadcast %15 : vector<1x128xf32> to vector<16x128xf32>
    %17 = arith.addf %14, %16 : vector<16x128xf32>
    %18 = math.tanh %17 : vector<16x128xf32>
    %c0_6 = arith.constant 0 : index
    %c0_7 = arith.constant 0 : index
    %19 = vector.load %arg5[%c0_6, %c0_7] : memref<1x128xf32, #tpu.memory_space<vmem>>, vector<1x128xf32>
    %20 = vector.broadcast %19 : vector<1x128xf32> to vector<16x128xf32>
    %21 = arith.mulf %18, %20 : vector<16x128xf32>
    %cst_8 = arith.constant dense<0.000000e+00> : vector<16xf32>
    %22 = vector.multi_reduction <add>, %21, %cst_8 [1] : vector<16x128xf32> to vector<16xf32>
    %23 = vector.shape_cast %22 : vector<16xf32> to vector<16x1xf32>
    %cst_9 = arith.constant 0xFF800000 : f32
    %24 = vector.broadcast %cst_9 : f32 to vector<16x1xf32>
    %25 = arith.select %10, %23, %24 : vector<16x1xi1>, vector<16x1xf32>
    %c0_10 = arith.constant 0 : index
    %c0_11 = arith.constant 0 : index
    %c0_12 = arith.constant 0 : index
    %26 = vector.load %arg7[%c0_10, %c0_11, %c0_12] : memref<1x1x1xf32, #tpu.memory_space<vmem>>, vector<1x1x1xf32>
    %27 = vector.shape_cast %26 : vector<1x1x1xf32> to vector<1x1xf32>
    %cst_13 = arith.constant dense<0xFF800000> : vector<1xf32>
    %28 = vector.multi_reduction <maximumf>, %25, %cst_13 [0] : vector<16x1xf32> to vector<1xf32>
    %29 = vector.shape_cast %28 : vector<1xf32> to vector<1x1xf32>
    %30 = arith.maximumf %27, %29 : vector<1x1xf32>
    %cst_14 = arith.constant -1.000000e+30 : f32
    %31 = vector.broadcast %cst_14 : f32 to vector<1x1xf32>
    %32 = arith.maximumf %30, %31 : vector<1x1xf32>
    %33 = arith.subf %27, %32 : vector<1x1xf32>
    %34 = math.exp %33 : vector<1x1xf32>
    %35 = vector.broadcast %32 : vector<1x1xf32> to vector<16x1xf32>
    %36 = arith.subf %25, %35 : vector<16x1xf32>
    %37 = math.exp %36 : vector<16x1xf32>
    %c0_15 = arith.constant 0 : index
    %c0_16 = arith.constant 0 : index
    %c0_17 = arith.constant 0 : index
    %38 = vector.load %arg8[%c0_15, %c0_16, %c0_17] : memref<1x1x1xf32, #tpu.memory_space<vmem>>, vector<1x1x1xf32>
    %39 = vector.shape_cast %38 : vector<1x1x1xf32> to vector<1x1xf32>
    %40 = arith.mulf %34, %39 : vector<1x1xf32>
    %cst_18 = arith.constant dense<0.000000e+00> : vector<1xf32>
    %41 = vector.multi_reduction <add>, %37, %cst_18 [0] : vector<16x1xf32> to vector<1xf32>
    %42 = vector.shape_cast %41 : vector<1xf32> to vector<1x1xf32>
    %43 = arith.addf %40, %42 : vector<1x1xf32>
    %c0_19 = arith.constant 0 : index
    %c0_20 = arith.constant 0 : index
    %c0_21 = arith.constant 0 : index
    %44 = vector.load %arg8[%c0_19, %c0_20, %c0_21] : memref<1x1x1xf32, #tpu.memory_space<vmem>>, vector<1x1x1xf32>
    %45 = vector.shape_cast %44 : vector<1x1x1xf32> to vector<1x1xf32>
    %46 = vector.shape_cast %43 : vector<1x1xf32> to vector<1x1x1xf32>
    tpu.vector_store %arg8[%c0_19, %c0_20, %c0_21], %46 {strides = array<i32>} : memref<1x1x1xf32, #tpu.memory_space<vmem>>, vector<1x1x1xf32>,
    %c0_22 = arith.constant 0 : index
    %c0_23 = arith.constant 0 : index
    %c0_24 = arith.constant 0 : index
    %47 = vector.load %arg7[%c0_22, %c0_23, %c0_24] : memref<1x1x1xf32, #tpu.memory_space<vmem>>, vector<1x1x1xf32>
    %48 = vector.shape_cast %47 : vector<1x1x1xf32> to vector<1x1xf32>
    %49 = vector.shape_cast %30 : vector<1x1xf32> to vector<1x1x1xf32>
    tpu.vector_store %arg7[%c0_22, %c0_23, %c0_24], %49 {strides = array<i32>} : memref<1x1x1xf32, #tpu.memory_space<vmem>>, vector<1x1x1xf32>,
    %c0_25 = arith.constant 0 : index
    %c0_26 = arith.constant 0 : index
    %50 = vector.load %arg6[%c0_25, %c0_26] : memref<16x1xf32, #tpu.memory_space<vmem>>, vector<16x1xf32>
    tpu.vector_store %arg6[%c0_25, %c0_26], %25 {strides = array<i32>} : memref<16x1xf32, #tpu.memory_space<vmem>>, vector<16x1xf32>,
    %51 = arith.truncf %37 : vector<16x1xf32> to vector<16x1xbf16>
    %cst_27 = arith.constant 1.000000e+00 : bf16
    %52 = vector.broadcast %cst_27 : bf16 to vector<1x16xbf16>
    %c2_i32_28 = arith.constant 2 : i32
    %53 = arith.cmpi slt, %1, %c2_i32_28 : i32
    %54 = arith.extui %53 : i1 to i32
    %c0_i32_29 = arith.constant 0 : i32
    %55 = arith.cmpi ne, %54, %c0_i32_29 : i32
    scf.if %55 {
      %59 = vector.broadcast %51 : vector<16x1xbf16> to vector<16x256xbf16>
      %60 = arith.mulf %59, %12 : vector<16x256xbf16>
      %c0_32 = arith.constant 0 : index
      %c0_33 = arith.constant 0 : index
      %c0_34 = arith.constant 0 : index
      %61 = vector.load %arg9[%c0_32, %c0_33, %c0_34] : memref<1x1x256xf32, #tpu.memory_space<vmem>>, vector<1x1x256xf32>
      %62 = vector.shape_cast %61 : vector<1x1x256xf32> to vector<1x256xf32>
      %63 = vector.broadcast %34 : vector<1x1xf32> to vector<1x256xf32>
      %64 = arith.mulf %63, %62 : vector<1x256xf32>
      %cst_35 = arith.constant dense<0.000000e+00> : vector<1x256xf32>
      %65 = tpu.matmul %52, %60, %cst_35 {dimension_numbers = #tpu.dot_dimension_numbers<[1], [0], [0], [1], [0, 0, 1, 1], [], []>} : vector<1x16xbf16>, vector<16x256xbf16>, vector<1x256xf32> -> vector<1x256xf32>
      %66 = arith.addf %64, %65 : vector<1x256xf32>
      %c0_36 = arith.constant 0 : index
      %c0_37 = arith.constant 0 : index
      %c0_38 = arith.constant 0 : index
      %67 = vector.load %arg9[%c0_36, %c0_37, %c0_38] : memref<1x1x256xf32, #tpu.memory_space<vmem>>, vector<1x1x256xf32>
      %68 = vector.shape_cast %67 : vector<1x1x256xf32> to vector<1x256xf32>
      %69 = vector.shape_cast %66 : vector<1x256xf32> to vector<1x1x256xf32>
      tpu.vector_store %arg9[%c0_36, %c0_37, %c0_38], %69 {strides = array<i32>} : memref<1x1x256xf32, #tpu.memory_space<vmem>>, vector<1x1x256xf32>,
    } else {
    }
    %c2_i32_30 = arith.constant 2 : i32
    %56 = arith.cmpi sge, %1, %c2_i32_30 : i32
    %57 = arith.extui %56 : i1 to i32
    %c0_i32_31 = arith.constant 0 : i32
    %58 = arith.cmpi ne, %57, %c0_i32_31 : i32
    scf.if %58 {
      %cst_32 = arith.constant 0.000000e+00 : bf16
      %59 = vector.broadcast %cst_32 : bf16 to vector<16x256xbf16>
      %60 = vector.shape_cast %10 : vector<16x1xi1> to vector<16x1xi1>
      %61 = vector.broadcast %60 : vector<16x1xi1> to vector<16x256xi1>
      %62 = arith.select %61, %12, %59 : vector<16x256xi1>, vector<16x256xbf16>
      %63 = vector.broadcast %51 : vector<16x1xbf16> to vector<16x256xbf16>
      %64 = arith.mulf %63, %62 : vector<16x256xbf16>
      %c0_33 = arith.constant 0 : index
      %c0_34 = arith.constant 0 : index
      %c0_35 = arith.constant 0 : index
      %65 = vector.load %arg9[%c0_33, %c0_34, %c0_35] : memref<1x1x256xf32, #tpu.memory_space<vmem>>, vector<1x1x256xf32>
      %66 = vector.shape_cast %65 : vector<1x1x256xf32> to vector<1x256xf32>
      %67 = vector.broadcast %34 : vector<1x1xf32> to vector<1x256xf32>
      %68 = arith.mulf %67, %66 : vector<1x256xf32>
      %cst_36 = arith.constant dense<0.000000e+00> : vector<1x256xf32>
      %69 = tpu.matmul %52, %64, %cst_36 {dimension_numbers = #tpu.dot_dimension_numbers<[1], [0], [0], [1], [0, 0, 1, 1], [], []>} : vector<1x16xbf16>, vector<16x256xbf16>, vector<1x256xf32> -> vector<1x256xf32>
      %70 = arith.addf %68, %69 : vector<1x256xf32>
      %c0_37 = arith.constant 0 : index
      %c0_38 = arith.constant 0 : index
      %c0_39 = arith.constant 0 : index
      %71 = vector.load %arg9[%c0_37, %c0_38, %c0_39] : memref<1x1x256xf32, #tpu.memory_space<vmem>>, vector<1x1x256xf32>
      %72 = vector.shape_cast %71 : vector<1x1x256xf32> to vector<1x256xf32>
      %73 = vector.shape_cast %70 : vector<1x256xf32> to vector<1x1x256xf32>
      tpu.vector_store %arg9[%c0_37, %c0_38, %c0_39], %73 {strides = array<i32>} : memref<1x1x256xf32, #tpu.memory_space<vmem>>, vector<1x1x256xf32>,
    } else {
    }
    return
  }
  func.func @transform_0(%arg0: i32, %arg1: i32) -> (i32, i32) {
    %c2_i32 = arith.constant 2 : i32
    %0 = arith.muli %arg0, %c2_i32 : i32
    %1 = arith.addi %0, %arg1 : i32
    %c2_i32_0 = arith.constant 2 : i32
    %2 = arith.minsi %1, %c2_i32_0 : i32
    %c0_i32 = arith.constant 0 : i32
    %c0_i32_1 = arith.constant 0 : i32
    return %2, %c0_i32 : i32, i32
  }
  func.func @transform_1(%arg0: i32, %arg1: i32) -> (i32, i32) {
    %c0_i32 = arith.constant 0 : i32
    %c0_i32_0 = arith.constant 0 : i32
    %c0_i32_1 = arith.constant 0 : i32
    return %c0_i32, %c0_i32_0 : i32, i32
  }
  func.func @transform_2(%arg0: i32, %arg1: i32) -> (i32, i32) {
    %c0_i32 = arith.constant 0 : i32
    %c0_i32_0 = arith.constant 0 : i32
    %c0_i32_1 = arith.constant 0 : i32
    return %c0_i32, %c0_i32_0 : i32, i32
  }
  func.func @transform_3(%arg0: i32, %arg1: i32) -> (i32, i32) {
    %c0_i32 = arith.constant 0 : i32
    %c0_i32_0 = arith.constant 0 : i32
    %c0_i32_1 = arith.constant 0 : i32
    return %c0_i32, %c0_i32_0 : i32, i32
  }
  func.func @transform_4(%arg0: i32, %arg1: i32) -> (i32, i32) {
    %c2_i32 = arith.constant 2 : i32
    %0 = arith.muli %arg0, %c2_i32 : i32
    %1 = arith.addi %0, %arg1 : i32
    %c0_i32 = arith.constant 0 : i32
    %c0_i32_0 = arith.constant 0 : i32
    return %1, %c0_i32 : i32, i32
  }
  func.func @transform_5(%arg0: i32, %arg1: i32) -> (i32, i32, i32) {
    %c0_i32 = arith.constant 0 : i32
    %c0_i32_0 = arith.constant 0 : i32
    %c0_i32_1 = arith.constant 0 : i32
    return %arg0, %c0_i32, %c0_i32_0 : i32, i32, i32
  }
  func.func @transform_6(%arg0: i32, %arg1: i32) -> (i32, i32, i32) {
    %c0_i32 = arith.constant 0 : i32
    %c0_i32_0 = arith.constant 0 : i32
    %c0_i32_1 = arith.constant 0 : i32
    return %arg0, %c0_i32, %c0_i32_0 : i32, i32, i32
  }
  func.func @transform_7(%arg0: i32, %arg1: i32) -> (i32, i32, i32) {
    %c0_i32 = arith.constant 0 : i32
    %c0_i32_0 = arith.constant 0 : i32
    %c0_i32_1 = arith.constant 0 : i32
    return %arg0, %c0_i32, %c0_i32_0 : i32, i32, i32
  }
}

</mosaic_0001>

<llo_original>
// kernel: abmil_forward.1
$region0: #{abmil_forward.1}
  #allocation0 [shape = 'u32[]', space=smem, size = 0x4, offset = 0x4, fixed_abs, tag = 'smem constant byte address 0x4 - core index']
  #allocation1 [shape = 'u32[144,128]{1,0:T(1,128)}', space=vmem, size = 0x12000, scoped, tag = 'internal scratch']
  %s0 = inlined_call_operand.hbm [shape: f32[40,256], index: 0, kind: input, shape index: {}]
  %s1 = inlined_call_operand.hbm [shape: bf16[256,128], index: 1, kind: input, shape index: {}]
  %s2 = inlined_call_operand.vmem [shape: f32[1,128], index: 2, kind: input, shape index: {}]
  %s3 = inlined_call_operand.vmem [shape: f32[1,128], index: 3, kind: input, shape index: {}]
  %s4 = inlined_call_operand.vmem [shape: f32[64,1], index: 4, kind: output, shape index: {0}]
  %s5 = inlined_call_operand.vmem [shape: f32[2,1,1], index: 5, kind: output, shape index: {1}]
  %s6 = inlined_call_operand.vmem [shape: f32[2,1,1], index: 6, kind: output, shape index: {2}]
  %s7 = inlined_call_operand.vmem [shape: f32[2,1,256], index: 7, kind: output, shape index: {3}]
  %8 = xla_tuple %s4, %s5, %s6, %s7
  %s9 = sld [smem:[#allocation0]]
  $region93: #{abmil_forward.1} parent=0
    _
  %s11 = ssub.s32 1, %s9
  %s12 = scalar_select 0, %s11, %s9
  $region1: #{abmil_forward.1} parent=0
    #allocation2 [shape = 'u8[32768]{0}', space=vmem, size = 0x8000, scoped, tag = 'input window, operand 0']
    #allocation3 [shape = 's32[2]{0}', space=sflag, size = 0x8, scoped, tag = 'scoped memory for abmil_forward.1']
    #allocation4 [shape = 'u8[65536]{0}', space=vmem, size = 0x10000, scoped, tag = 'input window, operand 1, single buffered']
    #allocation5 [shape = 's32[1]{0}', space=sflag, size = 0x4, scoped, tag = 'scoped memory for abmil_forward.1']
    %13 = vsyncpa [#allocation3], 0
    %s14 = scalar_lea.sflag [#allocation3], 1
    %15 = vsyncpa %s14, 0
    %16 = vsyncpa [#allocation5], 0
    loop: start=0, step=1, limit=6
    $region2: #{abmil_forward.1} parent=1 // loop_pre_header
      _
    $region3: #{abmil_forward.1} parent=1 // loop_header
      %s18 = sphi 0, %s22
      %p19 = scmp.ge.s32.totalorder %s18, 6
      %s25 = sphi 0, %s37
      %s26 = sphi 0, %s33
      %s27 = sphi 0, %s25
      %s28 = sphi 0, %s26
      %s29 = sphi 0, %s27
      %s30 = sphi 0, %s28
      %s48 = sphi 0, %s50
      %s51 = sphi 0, %s48
      %s52 = sphi 0, %s51
      %s68 = sphi 0, %s52
      %s72 = sphi 0, %s72
      %s74 = sphi 0, %s72
      %s75 = sphi 0, %s74
      %s89 = sphi 0, %s75
      %s93 = sphi 0, %s93
      %s95 = sphi 0, %s93
      %s96 = sphi 0, %s95
      %s110 = sphi 0, %s96
      %s114 = sphi 0, %s114
      %s116 = sphi 0, %s114
      %s117 = sphi 0, %s116
      %s131 = sphi 0, %s117
      %s141 = sphi 0, %s143
      %s144 = sphi 0, %s141
      %s145 = sphi 0, %s144
      %s161 = sphi 0, %s145
      %s167 = sphi 0, %s169
      %s170 = sphi 0, %s167
      %s171 = sphi 0, %s170
      %s187 = sphi 0, %s171
      %s193 = sphi 0, %s195
      %s196 = sphi 0, %s193
      %s197 = sphi 0, %s196
      %s213 = sphi 0, %s197
      %s219 = sphi 0, %s221
      %s222 = sphi 0, %s219
      %s223 = sphi 0, %s222
      %s239 = sphi 0, %s223
    $region4: #{abmil_forward.1} parent=1 // loop_header_branch
      %21 = sbr.rel (%p19) target = $region8
    $region5: #{abmil_forward.1} parent=1 // loop_body
      %s23 = ssub.s32 %s18, 1
      %s24 = ssub.s32 %s18, 2
      %s31 = sadd.s32 1, %s26
      %p32 = scmp.ge.s32.totalorder %s31, 2
      %s33 = scalar_select %p32, 0, %s31
      %s34 = sadd.s32 1, %s25
      %s35 = scalar_select %p32, %s34, %s25
      %p36 = scmp.ge.s32.totalorder %s35, 2
      %s37 = scalar_select %p36, 0, %s35
      %s38 = smul.u32 %s25, 2
      %s39 = sadd.s32 %s38, %s26
      %p40 = scmp.lt.s32.totalorder %s39, 2
      %s41 = scalar_select %p40, %s39, 2
      %s42 = smul.u32 %s37, 2
      %s43 = sadd.s32 %s42, %s33
      %p44 = scmp.lt.s32.totalorder %s43, 2
      %s45 = scalar_select %p44, %s43, 2
      %s46 = ssub.s32 %s41, %s45
      %p47 = scmp.eq.s32.totalorder %s46, 0
      %s49 = sadd.s32 %s48, 1
      %s50 = scalar_select %p47, %s48, %s49
      %p53 = pneg %p47
      %p54 = scmp.eq.s32.totalorder %s18, 3
      %p55 = por %p53, %p54
      %p56 = scmp.ne.s32.totalorder %s48, %s51
      %p57 = scmp.eq.s32.totalorder %s18, 0
      %p58 = por %p56, %p57
      %p59 = scmp.ne.s32.totalorder %s48, %s51
      %p60 = scmp.eq.s32.totalorder %s23, 3
      %p61 = por %p59, %p60
      %p62 = scmp.ne.s32.totalorder %s51, %s52
      %p63 = scmp.eq.s32.totalorder %s23, 0
      %p64 = por %p62, %p63
      %p65 = scmp.ne.s32.totalorder %s51, %s52
      %p66 = scmp.eq.s32.totalorder %s24, 3
      %p67 = por %p65, %p66
      %p69 = scmp.ne.s32.totalorder %s52, %s68
      %p70 = scmp.eq.s32.totalorder %s24, 0
      %p71 = por %p69, %p70
      %s73 = sadd.s32 %s72, 1
      %p76 = scmp.eq.s32.totalorder %s18, 3
      %p77 = scmp.ne.s32.totalorder %s72, %s74
      %p78 = scmp.eq.s32.totalorder %s18, 0
      %p79 = por %p77, %p78
      %p80 = scmp.ne.s32.totalorder %s72, %s74
      %p81 = scmp.eq.s32.totalorder %s23, 3
      %p82 = por %p80, %p81
      %p83 = scmp.ne.s32.totalorder %s74, %s75
      %p84 = scmp.eq.s32.totalorder %s23, 0
      %p85 = por %p83, %p84
      %p86 = scmp.ne.s32.totalorder %s74, %s75
      %p87 = scmp.eq.s32.totalorder %s24, 3
      %p88 = por %p86, %p87
      %p90 = scmp.ne.s32.totalorder %s75, %s89
      %p91 = scmp.eq.s32.totalorder %s24, 0
      %p92 = por %p90, %p91
      %s94 = sadd.s32 %s93, 1
      %p97 = scmp.eq.s32.totalorder %s18, 3
      %p98 = scmp.ne.s32.totalorder %s93, %s95
      %p99 = scmp.eq.s32.totalorder %s18, 0
      %p100 = por %p98, %p99
      %p101 = scmp.ne.s32.totalorder %s93, %s95
      %p102 = scmp.eq.s32.totalorder %s23, 3
      %p103 = por %p101, %p102
      %p104 = scmp.ne.s32.totalorder %s95, %s96
      %p105 = scmp.eq.s32.totalorder %s23, 0
      %p106 = por %p104, %p105
      %p107 = scmp.ne.s32.totalorder %s95, %s96
      %p108 = scmp.eq.s32.totalorder %s24, 3
      %p109 = por %p107, %p108
      %p111 = scmp.ne.s32.totalorder %s96, %s110
      %p112 = scmp.eq.s32.totalorder %s24, 0
      %p113 = por %p111, %p112
      %s115 = sadd.s32 %s114, 1
      %p118 = scmp.eq.s32.totalorder %s18, 3
      %p119 = scmp.ne.s32.totalorder %s114, %s116
      %p120 = scmp.eq.s32.totalorder %s18, 0
      %p121 = por %p119, %p120
      %p122 = scmp.ne.s32.totalorder %s114, %s116
      %p123 = scmp.eq.s32.totalorder %s23, 3
      %p124 = por %p122, %p123
      %p125 = scmp.ne.s32.totalorder %s116, %s117
      %p126 = scmp.eq.s32.totalorder %s23, 0
      %p127 = por %p125, %p126
      %p128 = scmp.ne.s32.totalorder %s116, %s117
      %p129 = scmp.eq.s32.totalorder %s24, 3
      %p130 = por %p128, %p129
      %p132 = scmp.ne.s32.totalorder %s117, %s131
      %p133 = scmp.eq.s32.totalorder %s24, 0
      %p134 = por %p132, %p133
      %s135 = smul.u32 %s25, 2
      %s136 = sadd.s32 %s135, %s26
      %s137 = smul.u32 %s37, 2
      %s138 = sadd.s32 %s137, %s33
      %s139 = ssub.s32 %s136, %s138
      %p140 = scmp.eq.s32.totalorder %s139, 0
      %s142 = sadd.s32 %s141, 1
      %s143 = scalar_select %p140, %s141, %s142
      %p146 = pneg %p140
      %p147 = scmp.eq.s32.totalorder %s18, 3
      %p148 = por %p146, %p147
      %p149 = scmp.ne.s32.totalorder %s141, %s144
      %p150 = scmp.eq.s32.totalorder %s18, 0
      %p151 = por %p149, %p150
      %p152 = scmp.ne.s32.totalorder %s141, %s144
      %p153 = scmp.eq.s32.totalorder %s23, 3
      %p154 = por %p152, %p153
      %p155 = scmp.ne.s32.totalorder %s144, %s145
      %p156 = scmp.eq.s32.totalorder %s23, 0
      %p157 = por %p155, %p156
      %p158 = scmp.ne.s32.totalorder %s144, %s145
      %p159 = scmp.eq.s32.totalorder %s24, 3
      %p160 = por %p158, %p159
      %p162 = scmp.ne.s32.totalorder %s145, %s161
      %p163 = scmp.eq.s32.totalorder %s24, 0
      %p164 = por %p162, %p163
      %s165 = ssub.s32 %s25, %s37
      %p166 = scmp.eq.s32.totalorder %s165, 0
      %s168 = sadd.s32 %s167, 1
      %s169 = scalar_select %p166, %s167, %s168
      %p172 = pneg %p166
      %p173 = scmp.eq.s32.totalorder %s18, 3
      %p174 = por %p172, %p173
      %p175 = scmp.ne.s32.totalorder %s167, %s170
      %p176 = scmp.eq.s32.totalorder %s18, 0
      %p177 = por %p175, %p176
      %p178 = scmp.ne.s32.totalorder %s167, %s170
      %p179 = scmp.eq.s32.totalorder %s23, 3
      %p180 = por %p178, %p179
      %p181 = scmp.ne.s32.totalorder %s170, %s171
      %p182 = scmp.eq.s32.totalorder %s23, 0
      %p183 = por %p181, %p182
      %p184 = scmp.ne.s32.totalorder %s170, %s171
      %p185 = scmp.eq.s32.totalorder %s24, 3
      %p186 = por %p184, %p185
      %p188 = scmp.ne.s32.totalorder %s171, %s187
      %p189 = scmp.eq.s32.totalorder %s24, 0
      %p190 = por %p188, %p189
      %s191 = ssub.s32 %s25, %s37
      %p192 = scmp.eq.s32.totalorder %s191, 0
      %s194 = sadd.s32 %s193, 1
      %s195 = scalar_select %p192, %s193, %s194
      %p198 = pneg %p192
      %p199 = scmp.eq.s32.totalorder %s18, 3
      %p200 = por %p198, %p199
      %p201 = scmp.ne.s32.totalorder %s193, %s196
      %p202 = scmp.eq.s32.totalorder %s18, 0
      %p203 = por %p201, %p202
      %p204 = scmp.ne.s32.totalorder %s193, %s196
      %p205 = scmp.eq.s32.totalorder %s23, 3
      %p206 = por %p204, %p205
      %p207 = scmp.ne.s32.totalorder %s196, %s197
      %p208 = scmp.eq.s32.totalorder %s23, 0
      %p209 = por %p207, %p208
      %p210 = scmp.ne.s32.totalorder %s196, %s197
      %p211 = scmp.eq.s32.totalorder %s24, 3
      %p212 = por %p210, %p211
      %p214 = scmp.ne.s32.totalorder %s197, %s213
      %p215 = scmp.eq.s32.totalorder %s24, 0
      %p216 = por %p214, %p215
      %s217 = ssub.s32 %s25, %s37
      %p218 = scmp.eq.s32.totalorder %s217, 0
      %s220 = sadd.s32 %s219, 1
      %s221 = scalar_select %p218, %s219, %s220
      %p224 = pneg %p218
      %p225 = scmp.eq.s32.totalorder %s18, 3
      %p226 = por %p224, %p225
      %p227 = scmp.ne.s32.totalorder %s219, %s222
      %p228 = scmp.eq.s32.totalorder %s18, 0
      %p229 = por %p227, %p228
      %p230 = scmp.ne.s32.totalorder %s219, %s222
      %p231 = scmp.eq.s32.totalorder %s23, 3
      %p232 = por %p230, %p231
      %p233 = scmp.ne.s32.totalorder %s222, %s223
      %p234 = scmp.eq.s32.totalorder %s23, 0
      %p235 = por %p233, %p234
      %p236 = scmp.ne.s32.totalorder %s222, %s223
      %p237 = scmp.eq.s32.totalorder %s24, 3
      %p238 = por %p236, %p237
      %p240 = scmp.ne.s32.totalorder %s223, %s239
      %p241 = scmp.eq.s32.totalorder %s24, 0
      %p242 = por %p240, %p241
      %p243 = scmp.le.s32.totalorder 1, %s18
      %p244 = scmp.lt.s32.totalorder %s18, 5
      %p245 = pnand %p243, %p244
      %p246 = pneg %p245
      // Predicated region
      $region9: #{abmil_forward.1} parent=5 // pred_check
        _
      $region10: #{abmil_forward.1} parent=5 // pred_check_branch
        %248 = sbr.rel (%p245) target = $region12
      $region11: #{abmil_forward.1} parent=5 // pred_region
        %s249 = ssub.s32 %s18, 1
        // Predicated region
        $region13: #{abmil_forward.1} parent=11 // pred_check
          %p250 = pneg %p85
        $region14: #{abmil_forward.1} parent=11 // pred_check_branch
          %252 = sbr.rel (%p250) target = $region16
        $region15: #{abmil_forward.1} parent=11 // pred_region
          %s254 = ssub.s32 2048, 2048
          %255 = vsyncadd [#allocation5], %s254
          %s256 = sshll.u32 [#allocation4], 4
          %s257 = int_to_ptr.vmem [resolvable:$true] %s256
          %262 = dma.hbm_to_vmem [thread:$0]  %s1, 2048, %s257, [#allocation5], 64, 64, 4
        $region16: #{abmil_forward.1} parent=11 // pred_fallthru
          _
        // Predicated region
        $region17: #{abmil_forward.1} parent=11 // pred_check
          %p263 = pneg %p106
        $region18: #{abmil_forward.1} parent=11 // pred_check_branch
          %265 = sbr.rel (%p263) target = $region20
        $region19: #{abmil_forward.1} parent=11 // pred_region
          _
        $region20: #{abmil_forward.1} parent=11 // pred_fallthru
          _
        // Predicated region
        $region21: #{abmil_forward.1} parent=11 // pred_check
          %p266 = pneg %p127
        $region22: #{abmil_forward.1} parent=11 // pred_check_branch
          %268 = sbr.rel (%p266) target = $region24
        $region23: #{abmil_forward.1} parent=11 // pred_region
          _
        $region24: #{abmil_forward.1} parent=11 // pred_fallthru
          _
      $region12: #{abmil_forward.1} parent=5 // pred_fallthru
        _
      %p269 = scmp.lt.s32.totalorder %s18, 4
      // Predicated region
      $region25: #{abmil_forward.1} parent=5 // pred_check
        %p270 = pneg %p269
      $region26: #{abmil_forward.1} parent=5 // pred_check_branch
        %272 = sbr.rel (%p270) target = $region28
      $region27: #{abmil_forward.1} parent=5 // pred_region
        // Predicated region
        $region29: #{abmil_forward.1} parent=27 // pred_check
          %p273 = pneg %p58
        $region30: #{abmil_forward.1} parent=27 // pred_check_branch
          %275 = sbr.rel (%p273) target = $region32
        $region31: #{abmil_forward.1} parent=27 // pred_region
          %s276 = sand.u32 %s48, 1
          %s277 = scalar_lea.sflag [#allocation3], %s276
          %s278 = sand.u32 %s48, 1
          %s279 = smul.addr %s278, 32
          %s280 = scalar_lea.vmem [#allocation2], %s279
          %s281 = smul.u32 %s25, 2
          %s282 = sadd.s32 %s281, %s26
          %p283 = scmp.lt.s32.totalorder %s282, 2
          %s284 = scalar_select %p283, %s282, 2
          %s285 = smul.u32 2, %s284
          %s286 = ssub.s32 5, %s285
          %p287 = scmp.lt.s32.totalorder %s286, 2
          %s288 = scalar_select %p287, %s286, 2
          %s289 = smul.u32 128, %s288
          %s290 = smul.u32 %s289, 2
          %s292 = ssub.s32 512, %s290
          %293 = vsyncadd %s277, %s292
          %p294 = scmp.ne.s32.totalorder 0, %s290
          %s295 = smul.addr %s285, 2
          %s296 = smul.addr %s295, 128
          %s297 = scalar_lea.hbm %s0, %s296
          %s298 = smul.u32 16, %s288
          %s299 = sshll.u32 %s280, 4
          %s300 = int_to_ptr.vmem [resolvable:$true] %s299
          %s301 = sshll.u32 %s298, 4
          %305 = dma.hbm_to_vmem [thread:$0]  (%p294), %s297, %s301, %s300, %s277, 256, 256, 16
        $region32: #{abmil_forward.1} parent=27 // pred_fallthru
          _
      $region28: #{abmil_forward.1} parent=5 // pred_fallthru
        _
      %p306 = scmp.le.s32.totalorder 1, %s18
      %p307 = scmp.lt.s32.totalorder %s18, 5
      %p308 = pnand %p306, %p307
      %p309 = pneg %p308
      // Predicated region
      $region33: #{abmil_forward.1} parent=5 // pred_check
        _
      $region34: #{abmil_forward.1} parent=5 // pred_check_branch
        %311 = sbr.rel (%p308) target = $region36
      $region35: #{abmil_forward.1} parent=5 // pred_region
        %s312 = ssub.s32 %s18, 1
        %s313 = sand.u32 %s51, 1
        %s314 = scalar_lea.sflag [#allocation3], %s313
        %s315 = sand.u32 %s51, 1
        %s316 = smul.addr %s315, 32
        %s317 = scalar_lea.vmem [#allocation2], %s316
        // Predicated region
        $region37: #{abmil_forward.1} parent=35 // pred_check
          %p318 = pneg %p64
        $region38: #{abmil_forward.1} parent=35 // pred_check_branch
          %320 = sbr.rel (%p318) target = $region40
        $region39: #{abmil_forward.1} parent=35 // pred_region
          %321 = dma.done %s314, 512
        $region40: #{abmil_forward.1} parent=35 // pred_fallthru
          _
        // Predicated region
        $region41: #{abmil_forward.1} parent=35 // pred_check
          %p322 = pneg %p85
        $region42: #{abmil_forward.1} parent=35 // pred_check_branch
          %324 = sbr.rel (%p322) target = $region44
        $region43: #{abmil_forward.1} parent=35 // pred_region
          %325 = dma.done [#allocation5], 2048
        $region44: #{abmil_forward.1} parent=35 // pred_fallthru
          _
        %s326 = sand.u32 %s51, 1
        %s327 = scalar_lea.sflag [#allocation3], %s326
        %s328 = sand.u32 %s51, 1
        %s329 = smul.addr %s328, 32
        %s330 = scalar_lea.vmem [#allocation2], %s329
        %p331 = pneg %p64
        %p332 = pneg %p61
        %p333 = pneg %p85
        %p334 = pneg %p82
        %p335 = pneg %p106
        %p336 = pneg %p103
        %p337 = pneg %p127
        %p338 = pneg %p124
        %p339 = pneg %p157
        %p340 = pneg %p154
        %s341 = smul.u32 %s27, 2
        %s342 = sadd.s32 %s341, %s28
        %s343 = smul.u32 2, %s342
        %p344 = scmp.lt.s32.totalorder %s343, 7
        %s345 = scalar_select %p344, %s343, 7
        %s346 = smul.addr %s345, 8
        %s347 = scalar_lea.vmem %s4, %s346
        %p348 = pneg %p183
        %p349 = pneg %p180
        %p350 = scmp.lt.s32.totalorder %s27, 1
        %s351 = scalar_select %p350, %s27, 1
        %s352 = scalar_lea.vmem %s5, %s351
        %p353 = pneg %p209
        %p354 = pneg %p206
        %p355 = scmp.lt.s32.totalorder %s27, 1
        %s356 = scalar_select %p355, %s27, 1
        %s357 = scalar_lea.vmem %s6, %s356
        %p358 = pneg %p235
        %p359 = pneg %p232
        %p360 = scmp.lt.s32.totalorder %s27, 1
        %s361 = scalar_select %p360, %s27, 1
        %s362 = smul.addr %s361, 2
        %s363 = scalar_lea.vmem %s7, %s362
        %s364 = smul.u32 %s27, 2
        %s365 = sadd.s32 %s364, %s28
        %p366 = scmp.lt.s32.totalorder %s365, 2
        %s367 = scalar_select %p366, %s365, 2
        %s368 = smul.u32 2, %s367
        %s369 = ssub.s32 5, %s368
        %p370 = scmp.lt.s32.totalorder %s369, 2
        %s371 = scalar_select %p370, %s369, 2
        %s372 = smul.u32 128, %s371
        %s373 = smul.u32 %s372, 2
        %s374 = smul.u32 %s27, 2
        %s375 = sadd.s32 %s374, %s28
        %s376 = smul.u32 2, %s375
        %p377 = scmp.lt.s32.totalorder %s376, 7
        %s378 = scalar_select %p377, %s376, 7
        %s379 = smul.addr %s378, 8
        %s380 = scalar_lea.vmem %s4, %s379
        %s381 = smul.u32 %s27, 2
        %s382 = sadd.s32 %s381, %s28
        %s383 = smul.u32 2, %s382
        %p384 = scmp.lt.s32.totalorder %s27, 1
        %s385 = scalar_select %p384, %s27, 1
        %s386 = scalar_lea.vmem %s5, %s385
        %p387 = scmp.lt.s32.totalorder %s27, 1
        %s388 = scalar_select %p387, %s27, 1
        %s389 = scalar_lea.vmem %s6, %s388
        %p390 = scmp.lt.s32.totalorder %s27, 1
        %s391 = scalar_select %p390, %s27, 1
        %s392 = smul.addr %s391, 2
        %s393 = scalar_lea.vmem %s7, %s392
        %s398 = smul.u32 %s27, 2
        %s399 = sadd.s32 %s398, %s28
        %p400 = scmp.eq.s32.totalorder %s28, 0
        // Predicated region
        $region45: #{abmil_forward.1} parent=35 // pred_check
          %p401 = pneg %p400
        $region46: #{abmil_forward.1} parent=35 // pred_check_branch
          %403 = sbr.rel (%p401) target = $region48
        $region47: #{abmil_forward.1} parent=35 // pred_region
          %vm404 = vcmask 0
          %405 = vst.msk [vmem:[%s386] sm:$0x1] %vm404, -inf
          %406 = vst.msk [vmem:[%s389] sm:$0x1] %vm404, 0.0
          %v407 = vlaneseq
          %vm408 = vcmp.ge.s32.totalorder %v407, 0
          %vm409 = vcmp.lt.s32.totalorder %v407, 256
          %vm410 = vmand %vm408, %vm409
          %411 = vst.msk [vmem:[%s393] sm:$0x3] %vm410, 0.0
        $region48: #{abmil_forward.1} parent=35 // pred_fallthru
          _
        %v412 = vlaneseq
        %v413 = vshrl.u32 %v412, 7
        %v414 = vadd.s32 %v413, 8
        %s415 = smul.u32 %s399, 16
        %v416 = vstv %s415
        %v417 = vadd.s32 %v416, %v413
        %v418 = vadd.s32 %v416, %v414
        %vm419 = vcmp.lt.s32.totalorder %v417, 40
        %vm420 = vcmp.lt.s32.totalorder %v418, 40
        %v421 = vld [vmem:[%s317] sm:$0xff]
        %v422 = vld [vmem:[%s317 + $0x8] sm:$0xff]
        %v423 = vld [vmem:[%s317 + $0x10] sm:$0xff]
        %v424 = vld [vmem:[%s317 + $0x18] sm:$0xff]
        %v425 = vpack.c.bf16 %v423, %v421
        %v426 = vpack.c.bf16 %v424, %v422
        %v427 = vld [vmem:[#allocation4] sm:$0xf]
        %v428 = vld [vmem:[#allocation4 + $0x4] sm:$0xf]
        %v429 = vld [vmem:[#allocation4 + $0x8] sm:$0xf]
        %v430 = vld [vmem:[#allocation4 + $0xc] sm:$0xf]
        %v431 = vld [vmem:[#allocation4 + $0x10] sm:$0xf]
        %v432 = vld [vmem:[#allocation4 + $0x14] sm:$0xf]
        %v433 = vld [vmem:[#allocation4 + $0x18] sm:$0xf]
        %v434 = vld [vmem:[#allocation4 + $0x1c] sm:$0xf]
        %v435 = vld [vmem:[#allocation4 + $0x20] sm:$0xf]
        %v436 = vld [vmem:[#allocation4 + $0x24] sm:$0xf]
        %v437 = vld [vmem:[#allocation4 + $0x28] sm:$0xf]
        %v438 = vld [vmem:[#allocation4 + $0x2c] sm:$0xf]
        %v439 = vld [vmem:[#allocation4 + $0x30] sm:$0xf]
        %v440 = vld [vmem:[#allocation4 + $0x34] sm:$0xf]
        %v441 = vld [vmem:[#allocation4 + $0x38] sm:$0xf]
        %v442 = vld [vmem:[#allocation4 + $0x3c] sm:$0xf]
        %v443 = vld [vmem:[#allocation4 + $0x40] sm:$0xf]
        %v444 = vld [vmem:[#allocation4 + $0x44] sm:$0xf]
        %v445 = vld [vmem:[#allocation4 + $0x48] sm:$0xf]
        %v446 = vld [vmem:[#allocation4 + $0x4c] sm:$0xf]
        %v447 = vld [vmem:[#allocation4 + $0x50] sm:$0xf]
        %v448 = vld [vmem:[#allocation4 + $0x54] sm:$0xf]
        %v449 = vld [vmem:[#allocation4 + $0x58] sm:$0xf]
        %v450 = vld [vmem:[#allocation4 + $0x5c] sm:$0xf]
        %v451 = vld [vmem:[#allocation4 + $0x60] sm:$0xf]
        %v452 = vld [vmem:[#allocation4 + $0x64] sm:$0xf]
        %v453 = vld [vmem:[#allocation4 + $0x68] sm:$0xf]
        %v454 = vld [vmem:[#allocation4 + $0x6c] sm:$0xf]
        %v455 = vld [vmem:[#allocation4 + $0x70] sm:$0xf]
        %v456 = vld [vmem:[#allocation4 + $0x74] sm:$0xf]
        %v457 = vld [vmem:[#allocation4 + $0x78] sm:$0xf]
        %v458 = vld [vmem:[#allocation4 + $0x7c] sm:$0xf]
        %v459 = vld [vmem:[%s2] sm:$0x1]
        %v461 = vlaneseq
        %v462 = vshrl.u32 %v461, 7
        %v463 = vsub.s32 0, %v462
        %v464 = vrot.slane %v459, %v463
        %v498 = vunpack.c.l.b16 %v427
        %v499 = vunpack.c.l.b16 %v428
        %v500 = vunpack.c.l.b16 %v429
        %v501 = vunpack.c.l.b16 %v430
        %v502 = vunpack.c.l.b16 %v431
        %v503 = vunpack.c.l.b16 %v432
        %v504 = vunpack.c.l.b16 %v433
        %v505 = vunpack.c.l.b16 %v434
        %v506 = vunpack.c.l.b16 %v435
        %v507 = vunpack.c.l.b16 %v436
        %v508 = vunpack.c.l.b16 %v437
        %v509 = vunpack.c.l.b16 %v438
        %v510 = vunpack.c.l.b16 %v439
        %v511 = vunpack.c.l.b16 %v440
        %v512 = vunpack.c.l.b16 %v441
        %v513 = vunpack.c.l.b16 %v442
        %v514 = vunpack.c.l.b16 %v443
        %v515 = vunpack.c.l.b16 %v444
        %v516 = vunpack.c.l.b16 %v445
        %v517 = vunpack.c.l.b16 %v446
        %v518 = vunpack.c.l.b16 %v447
        %v519 = vunpack.c.l.b16 %v448
        %v520 = vunpack.c.l.b16 %v449
        %v521 = vunpack.c.l.b16 %v450
        %v522 = vunpack.c.l.b16 %v451
        %v523 = vunpack.c.l.b16 %v452
        %v524 = vunpack.c.l.b16 %v453
        %v525 = vunpack.c.l.b16 %v454
        %v526 = vunpack.c.l.b16 %v455
        %v527 = vunpack.c.l.b16 %v456
        %v528 = vunpack.c.l.b16 %v457
        %v529 = vunpack.c.l.b16 %v458
        %v530 = vpack.c.b16 %v499, %v498
        %v531 = vpack.c.b16 %v501, %v500
        %v532 = vpack.c.b16 %v503, %v502
        %v533 = vpack.c.b16 %v505, %v504
        %v534 = vpack.c.b16 %v507, %v506
        %v535 = vpack.c.b16 %v509, %v508
        %v536 = vpack.c.b16 %v511, %v510
        %v537 = vpack.c.b16 %v513, %v512
        %v538 = vpack.c.b16 %v515, %v514
        %v539 = vpack.c.b16 %v517, %v516
        %v540 = vpack.c.b16 %v519, %v518
        %v541 = vpack.c.b16 %v521, %v520
        %v542 = vpack.c.b16 %v523, %v522
        %v543 = vpack.c.b16 %v525, %v524
        %v544 = vpack.c.b16 %v527, %v526
        %v545 = vpack.c.b16 %v529, %v528
        %562 = vmatprep.subr.bf16.mxu0 0
        %563 = vmatpush1.bf16.msra.mxu0 %v530
        %564 = vmatprep.subr.bf16.mxu0 0
        %565 = vmatpush1.bf16.msra.mxu0 %v531
        %566 = vmatprep.subr.bf16.mxu0 0
        %567 = vmatpush1.bf16.msra.mxu0 %v532
        %568 = vmatprep.subr.bf16.mxu0 0
        %569 = vmatpush1.bf16.msra.mxu0 %v533
        %570 = vmatprep.subr.bf16.mxu0 0
        %571 = vmatpush1.bf16.msra.mxu0 %v534
        %572 = vmatprep.subr.bf16.mxu0 0
        %573 = vmatpush1.bf16.msra.mxu0 %v535
        %574 = vmatprep.subr.bf16.mxu0 0
        %575 = vmatpush1.bf16.msra.mxu0 %v536
        %576 = vmatprep.subr.bf16.mxu0 0
        %577 = vmatpush1.bf16.msra.mxu0 %v537
        %578 = vmatprep.subr.bf16.mxu0 0
        %579 = vmatpush1.bf16.msra.mxu0 %v538
        %580 = vmatprep.subr.bf16.mxu0 0
        %581 = vmatpush1.bf16.msra.mxu0 %v539
        %582 = vmatprep.subr.bf16.mxu0 0
        %583 = vmatpush1.bf16.msra.mxu0 %v540
        %584 = vmatprep.subr.bf16.mxu0 0
        %585 = vmatpush1.bf16.msra.mxu0 %v541
        %586 = vmatprep.subr.bf16.mxu0 0
        %587 = vmatpush1.bf16.msra.mxu0 %v542
        %588 = vmatprep.subr.bf16.mxu0 0
        %589 = vmatpush1.bf16.msra.mxu0 %v543
        %590 = vmatprep.subr.bf16.mxu0 0
        %591 = vmatpush1.bf16.msra.mxu0 %v544
        %592 = vmatprep.subr.bf16.mxu0 0
        %593 = vmatpush1.bf16.msra.mxu0 %v545
        %594 = vmatprep.mubr.bf16.mxu0 %v426
        %595 = vmatmul.mubr.bf16.gmra.mrb[0].mxu0 %v425
        %v596 = vpop.f32.mrb[0].mxu0
        %v597 = vadd.f32 %v464, %v596
        %v598 = vpop.f32.mrb[0].mxu0
        %v599 = vpop.f32.mrb[0].mxu0
        %v600 = vadd.f32 %v464, %v599
        %v601 = vpop.f32.mrb[0].mxu0
        %602 = vdwg.mxu0
        %v603 = vtanh.pop %v597
        %v604 = vtanh.pop %v600
        %v605 = vld [vmem:[%s3] sm:$0x1]
        %v607 = vlaneseq
        %v608 = vshrl.u32 %v607, 7
        %v609 = vsub.s32 0, %v608
        %v610 = vrot.slane %v605, %v609
        %v612 = vmul.f32 %v603, %v610
        %v613 = vmul.f32 %v604, %v610
        %614 = vadd.xlane.f32.xlu0 %v612
        %v615 = vpop.xlane.xlu0 %614
        %616 = vadd.xlane.f32.xlu0 %v613
        %v617 = vpop.xlane.xlu0 %616
        %v618 = vsel %vm419, %v615, -inf
        %v619 = vsel %vm420, %v617, -inf
        %v620 = vld [vmem:[%s386] sm:$0x1]
        %v621 = vmax.f32 %v618, %v619
        %v622 = vrot.slane %v621, 4
        %v623 = vmax.f32 %v621, %v622
        %v624 = vrot.slane %v623, 2
        %v625 = vmax.f32 %v623, %v624
        %v626 = vrot.slane %v625, 1
        %v627 = vmax.f32 %v625, %v626
        %v628 = vmax.f32 %v620, %v627
        %v629 = vmax.f32 %v628, -1e+30
        %v630 = vsub.f32 %v620, %v629
        %v631 = vmul.f32 %v630, 1.442695
        %v632 = vpow.pop %v631
        %v634 = vlaneseq
        %v635 = vshrl.u32 %v634, 7
        %v636 = vsub.s32 0, %v635
        %v637 = vrot.slane %v629, %v636
        %v639 = vsub.f32 %v618, %v637
        %v640 = vsub.f32 %v619, %v637
        %v641 = vmul.f32 %v639, 1.442695
        %v642 = vpow.pop %v641
        %v643 = vmul.f32 %v640, 1.442695
        %v644 = vpow.pop %v643
        %v645 = vld [vmem:[%s389] sm:$0x1]
        %v646 = vmul.f32 %v632, %v645
        %vm647 = vcmask 7168
        %v648 = vsel %vm647, %v642, 0.0
        %v649 = vsel %vm647, %v644, 0.0
        %v650 = vadd.f32 %v648, %v649
        %v651 = vrot.slane %v650, 4
        %v652 = vadd.f32 %v650, %v651
        %v653 = vrot.slane %v652, 2
        %v654 = vadd.f32 %v652, %v653
        %v655 = vrot.slane %v654, 1
        %v656 = vadd.f32 %v654, %v655
        %v657 = vadd.f32 %v646, %v656
        %vm658 = vcmask 0
        %659 = vst.msk [vmem:[%s389] sm:$0x1] %vm658, %v657
        %660 = vst.msk [vmem:[%s386] sm:$0x1] %vm658, %v628
        %661 = vst.msk [vmem:[%s380] sm:$0xff] %vm647, %v618
        %662 = vst.msk [vmem:[%s380 + $0x8] sm:$0xff] %vm647, %v619
        %v663 = vpack.c.bf16 %v644, %v642
        %p664 = scmp.lt.s32.totalorder %s399, 2
        // Predicated region
        $region49: #{abmil_forward.1} parent=35 // pred_check
          %p665 = pneg %p664
        $region50: #{abmil_forward.1} parent=35 // pred_check_branch
          %667 = sbr.rel (%p665) target = $region52
        $region51: #{abmil_forward.1} parent=35 // pred_region
          %669 = vset.pattern.permute.xlu0 0
          %670 = vperm.xlu0 %669, %v663
          %v671 = vpop.permute.xlu0 %670
          %v673 = vmul.bf16 %v671, %v425
          %v674 = vmul.bf16 %v671, %v426
          %v675 = vld [vmem:[%s393] sm:$0x3]
          %677 = vset.pattern.permute.xlu0 0
          %678 = vperm.xlu0 %677, %v632
          %v679 = vpop.permute.xlu0 %678
          %v681 = vlaneseq
          %v682 = vshrl.u32 %v681, 7
          %v683 = vsub.s32 0, %v682
          %v684 = vrot.slane %v679, %v683
          %v685 = vmul.f32 %v684, %v675
          %vm686 = vcmask 130048
          %v688 = vsel %vm686, 1065369472, 0
          %690 = vmatprep.subr.bf16.mxu0 %v674
          %691 = vmatpush1.bf16.msra.mxu0 %v673
          %692 = vmatprep.subr.bf16.mxu0 0
          %693 = vmatpush1.bf16.msra.mxu0 0
          %694 = vmatprep.subr.bf16.mxu0 0
          %695 = vmatpush1.bf16.msra.mxu0 0
          %696 = vmatprep.subr.bf16.mxu0 0
          %697 = vmatpush1.bf16.msra.mxu0 0
          %698 = vmatprep.subr.bf16.mxu0 0
          %699 = vmatpush1.bf16.msra.mxu0 0
          %700 = vmatprep.subr.bf16.mxu0 0
          %701 = vmatpush1.bf16.msra.mxu0 0
          %702 = vmatprep.subr.bf16.mxu0 0
          %703 = vmatpush1.bf16.msra.mxu0 0
          %704 = vmatprep.subr.bf16.mxu0 0
          %705 = vmatpush1.bf16.msra.mxu0 0
          %706 = vmatprep.subr.bf16.mxu0 0
          %707 = vmatpush1.bf16.msra.mxu0 0
          %708 = vmatprep.subr.bf16.mxu0 0
          %709 = vmatpush1.bf16.msra.mxu0 0
          %710 = vmatprep.subr.bf16.mxu0 0
          %711 = vmatpush1.bf16.msra.mxu0 0
          %712 = vmatprep.subr.bf16.mxu0 0
          %713 = vmatpush1.bf16.msra.mxu0 0
          %714 = vmatprep.subr.bf16.mxu0 0
          %715 = vmatpush1.bf16.msra.mxu0 0
          %716 = vmatprep.subr.bf16.mxu0 0
          %717 = vmatpush1.bf16.msra.mxu0 0
          %718 = vmatprep.subr.bf16.mxu0 0
          %719 = vmatpush1.bf16.msra.mxu0 0
          %720 = vmatprep.subr.bf16.mxu0 0
          %721 = vmatpush1.bf16.msra.mxu0 0
          %722 = vmatprep.mubr.bf16.mxu0 0
          %723 = vmatmul.mubr.bf16.gmra.mrb[0].mxu0 %v688
          %v724 = vpop.f32.mrb[0].mxu0
          %v725 = vadd.f32 0.0, %v724
          %v726 = vpop.f32.mrb[0].mxu0
          %v727 = vadd.f32 0.0, %v726
          %v728 = vpop.f32.mrb[0].mxu0
          %v729 = vpop.f32.mrb[0].mxu0
          %730 = vdwg.mxu0
          %v733 = vcombine.low %v725, %v727
          %v735 = vunpack.c.l.s4 1966171168
          %v736 = vunpack.c.0.s8 %v735
          %v737 = vlaneseq
          %v738 = vshrl.u32 %v737, 7
          %v739 = vsub.s32 %v736, %v738
          %v740 = vrot.slane %v733, %v739
          %v742 = vunpack.c.l.s4 1966171168
          %v743 = vunpack.c.0.s8 %v742
          %v744 = vlaneseq
          %v745 = vshrl.u32 %v744, 7
          %v746 = vsub.s32 %v743, %v745
          %v747 = vrot.slane %v740, %v746
          %v749 = vadd.f32 %v685, %v747
          %v750 = vlaneseq
          %vm751 = vcmp.ge.s32.totalorder %v750, 0
          %vm752 = vcmp.lt.s32.totalorder %v750, 256
          %vm753 = vmand %vm751, %vm752
          %754 = vst.msk [vmem:[%s393] sm:$0x3] %vm753, %v749
        $region52: #{abmil_forward.1} parent=35 // pred_fallthru
          _
        %p755 = scmp.ge.s32.totalorder %s399, 2
        // Predicated region
        $region53: #{abmil_forward.1} parent=35 // pred_check
          %p756 = pneg %p755
        $region54: #{abmil_forward.1} parent=35 // pred_check_branch
          %758 = sbr.rel (%p756) target = $region56
        $region55: #{abmil_forward.1} parent=35 // pred_region
          %v759 = vsel %vm419, 1, 0
          %v760 = vsel %vm420, 1, 0
          %vm761 = vcmp.eq.s32.totalorder %v759, 1
          %vm762 = vcmp.eq.s32.totalorder %v760, 1
          %vm763 = vmpackc.low %vm761, %vm761
          %vm764 = vmpackc.low %vm762, %vm762
          %v765 = vsel %vm763, 65537, 0
          %v766 = vsel %vm764, 65537, 0
          %v767 = vunpack.c.l.b16 %v765
          %v768 = vunpack.c.l.b16 %v766
          %v769 = vpack.c.b16 %v768, %v767
          %vm770 = vcmp.ne.s16.totalorder %v769, 0
          %v771 = vsel %vm770, %v425, 0
          %v772 = vsel %vm770, %v426, 0
          %774 = vset.pattern.permute.xlu0 0
          %775 = vperm.xlu0 %774, %v663
          %v776 = vpop.permute.xlu0 %775
          %v778 = vmul.bf16 %v776, %v771
          %v779 = vmul.bf16 %v776, %v772
          %v780 = vld [vmem:[%s393] sm:$0x3]
          %782 = vset.pattern.permute.xlu0 0
          %783 = vperm.xlu0 %782, %v632
          %v784 = vpop.permute.xlu0 %783
          %v786 = vlaneseq
          %v787 = vshrl.u32 %v786, 7
          %v788 = vsub.s32 0, %v787
          %v789 = vrot.slane %v784, %v788
          %v790 = vmul.f32 %v789, %v780
          %vm791 = vcmask 130048
          %v793 = vsel %vm791, 1065369472, 0
          %795 = vmatprep.subr.bf16.mxu0 %v779
          %796 = vmatpush1.bf16.msra.mxu0 %v778
          %797 = vmatprep.subr.bf16.mxu0 0
          %798 = vmatpush1.bf16.msra.mxu0 0
          %799 = vmatprep.subr.bf16.mxu0 0
          %800 = vmatpush1.bf16.msra.mxu0 0
          %801 = vmatprep.subr.bf16.mxu0 0
          %802 = vmatpush1.bf16.msra.mxu0 0
          %803 = vmatprep.subr.bf16.mxu0 0
          %804 = vmatpush1.bf16.msra.mxu0 0
          %805 = vmatprep.subr.bf16.mxu0 0
          %806 = vmatpush1.bf16.msra.mxu0 0
          %807 = vmatprep.subr.bf16.mxu0 0
          %808 = vmatpush1.bf16.msra.mxu0 0
          %809 = vmatprep.subr.bf16.mxu0 0
          %810 = vmatpush1.bf16.msra.mxu0 0
          %811 = vmatprep.subr.bf16.mxu0 0
          %812 = vmatpush1.bf16.msra.mxu0 0
          %813 = vmatprep.subr.bf16.mxu0 0
          %814 = vmatpush1.bf16.msra.mxu0 0
          %815 = vmatprep.subr.bf16.mxu0 0
          %816 = vmatpush1.bf16.msra.mxu0 0
          %817 = vmatprep.subr.bf16.mxu0 0
          %818 = vmatpush1.bf16.msra.mxu0 0
          %819 = vmatprep.subr.bf16.mxu0 0
          %820 = vmatpush1.bf16.msra.mxu0 0
          %821 = vmatprep.subr.bf16.mxu0 0
          %822 = vmatpush1.bf16.msra.mxu0 0
          %823 = vmatprep.subr.bf16.mxu0 0
          %824 = vmatpush1.bf16.msra.mxu0 0
          %825 = vmatprep.subr.bf16.mxu0 0
          %826 = vmatpush1.bf16.msra.mxu0 0
          %827 = vmatprep.mubr.bf16.mxu0 0
          %828 = vmatmul.mubr.bf16.gmra.mrb[0].mxu0 %v793
          %v829 = vpop.f32.mrb[0].mxu0
          %v830 = vadd.f32 0.0, %v829
          %v831 = vpop.f32.mrb[0].mxu0
          %v832 = vadd.f32 0.0, %v831
          %v833 = vpop.f32.mrb[0].mxu0
          %v834 = vpop.f32.mrb[0].mxu0
          %835 = vdwg.mxu0
          %v838 = vcombine.low %v830, %v832
          %v840 = vunpack.c.l.s4 1966171168
          %v841 = vunpack.c.0.s8 %v840
          %v842 = vlaneseq
          %v843 = vshrl.u32 %v842, 7
          %v844 = vsub.s32 %v841, %v843
          %v845 = vrot.slane %v838, %v844
          %v847 = vunpack.c.l.s4 1966171168
          %v848 = vunpack.c.0.s8 %v847
          %v849 = vlaneseq
          %v850 = vshrl.u32 %v849, 7
          %v851 = vsub.s32 %v848, %v850
          %v852 = vrot.slane %v845, %v851
          %v854 = vadd.f32 %v790, %v852
          %v855 = vlaneseq
          %vm856 = vcmp.ge.s32.totalorder %v855, 0
          %vm857 = vcmp.lt.s32.totalorder %v855, 256
          %vm858 = vmand %vm856, %vm857
          %859 = vst.msk [vmem:[%s393] sm:$0x3] %vm858, %v854
        $region56: #{abmil_forward.1} parent=35 // pred_fallthru
          _
        %s860 = smul.u32 %s27, 2
        %s861 = sadd.s32 %s860, %s28
        %s862 = smul.u32 2, %s861
        %p863 = scmp.lt.s32.totalorder %s862, 7
        %s864 = scalar_select %p863, %s862, 7
        %s865 = smul.addr %s864, 8
        %s866 = scalar_lea.vmem %s4, %s865
        %p867 = scmp.lt.s32.totalorder %s27, 1
        %s868 = scalar_select %p867, %s27, 1
        %s869 = scalar_lea.vmem %s5, %s868
        %p870 = scmp.lt.s32.totalorder %s27, 1
        %s871 = scalar_select %p870, %s27, 1
        %s872 = scalar_lea.vmem %s6, %s871
        %p873 = scmp.lt.s32.totalorder %s27, 1
        %s874 = scalar_select %p873, %s27, 1
        %s875 = smul.addr %s874, 2
        %s876 = scalar_lea.vmem %s7, %s875
        // Predicated region
        $region57: #{abmil_forward.1} parent=35 // pred_check
          %p877 = pneg %p154
        $region58: #{abmil_forward.1} parent=35 // pred_check_branch
          %879 = sbr.rel (%p877) target = $region60
        $region59: #{abmil_forward.1} parent=35 // pred_region
          %s880 = smul.u32 %s27, 2
          %s881 = sadd.s32 %s880, %s28
          %s882 = smul.u32 2, %s881
        $region60: #{abmil_forward.1} parent=35 // pred_fallthru
          _
        // Predicated region
        $region61: #{abmil_forward.1} parent=35 // pred_check
          %p883 = pneg %p180
        $region62: #{abmil_forward.1} parent=35 // pred_check_branch
          %885 = sbr.rel (%p883) target = $region64
        $region63: #{abmil_forward.1} parent=35 // pred_region
          _
        $region64: #{abmil_forward.1} parent=35 // pred_fallthru
          _
        // Predicated region
        $region65: #{abmil_forward.1} parent=35 // pred_check
          %p886 = pneg %p206
        $region66: #{abmil_forward.1} parent=35 // pred_check_branch
          %888 = sbr.rel (%p886) target = $region68
        $region67: #{abmil_forward.1} parent=35 // pred_region
          _
        $region68: #{abmil_forward.1} parent=35 // pred_fallthru
          _
        // Predicated region
        $region69: #{abmil_forward.1} parent=35 // pred_check
          %p889 = pneg %p232
        $region70: #{abmil_forward.1} parent=35 // pred_check_branch
          %891 = sbr.rel (%p889) target = $region72
        $region71: #{abmil_forward.1} parent=35 // pred_region
          _
        $region72: #{abmil_forward.1} parent=35 // pred_fallthru
          _
      $region36: #{abmil_forward.1} parent=5 // pred_fallthru
        _
      %p892 = scmp.le.s32.totalorder 2, %s18
      // Predicated region
      $region73: #{abmil_forward.1} parent=5 // pred_check
        %p893 = pneg %p892
      $region74: #{abmil_forward.1} parent=5 // pred_check_branch
        %895 = sbr.rel (%p893) target = $region76
      $region75: #{abmil_forward.1} parent=5 // pred_region
        %s896 = ssub.s32 %s18, 2
        // Predicated region
        $region77: #{abmil_forward.1} parent=75 // pred_check
          %p897 = pneg %p160
        $region78: #{abmil_forward.1} parent=75 // pred_check_branch
          %899 = sbr.rel (%p897) target = $region80
        $region79: #{abmil_forward.1} parent=75 // pred_region
          %s900 = smul.u32 %s29, 2
          %s901 = sadd.s32 %s900, %s30
          %s902 = smul.u32 2, %s901
          %p903 = scmp.lt.s32.totalorder %s902, 7
          %s904 = scalar_select %p903, %s902, 7
          %s905 = smul.addr %s904, 8
          %s906 = scalar_lea.vmem %s4, %s905
        $region80: #{abmil_forward.1} parent=75 // pred_fallthru
          _
        // Predicated region
        $region81: #{abmil_forward.1} parent=75 // pred_check
          %p907 = pneg %p186
        $region82: #{abmil_forward.1} parent=75 // pred_check_branch
          %909 = sbr.rel (%p907) target = $region84
        $region83: #{abmil_forward.1} parent=75 // pred_region
          %p910 = scmp.lt.s32.totalorder %s29, 1
          %s911 = scalar_select %p910, %s29, 1
          %s912 = scalar_lea.vmem %s5, %s911
        $region84: #{abmil_forward.1} parent=75 // pred_fallthru
          _
        // Predicated region
        $region85: #{abmil_forward.1} parent=75 // pred_check
          %p913 = pneg %p212
        $region86: #{abmil_forward.1} parent=75 // pred_check_branch
          %915 = sbr.rel (%p913) target = $region88
        $region87: #{abmil_forward.1} parent=75 // pred_region
          %p916 = scmp.lt.s32.totalorder %s29, 1
          %s917 = scalar_select %p916, %s29, 1
          %s918 = scalar_lea.vmem %s6, %s917
        $region88: #{abmil_forward.1} parent=75 // pred_fallthru
          _
        // Predicated region
        $region89: #{abmil_forward.1} parent=75 // pred_check
          %p919 = pneg %p238
        $region90: #{abmil_forward.1} parent=75 // pred_check_branch
          %921 = sbr.rel (%p919) target = $region92
        $region91: #{abmil_forward.1} parent=75 // pred_region
          %p922 = scmp.lt.s32.totalorder %s29, 1
          %s923 = scalar_select %p922, %s29, 1
          %s924 = smul.addr %s923, 2
          %s925 = scalar_lea.vmem %s7, %s924
        $region92: #{abmil_forward.1} parent=75 // pred_fallthru
          _
      $region76: #{abmil_forward.1} parent=5 // pred_fallthru
        _
    $region6: #{abmil_forward.1} parent=1 // loop_footer
      %s22 = sadd.s32 1, %s18
    $region7: #{abmil_forward.1} parent=1 // loop_footer_branch
      %17 = sbr.rel target = $region3
    $region8: #{abmil_forward.1} parent=1 // loop_exit
      _
    %926 = vsyncpa [#allocation3], 1
    %s927 = scalar_lea.sflag [#allocation3], 1
    %928 = vsyncpa %s927, 1
    %929 = vsyncpa [#allocation5], 1

</llo_original>
